<compile_context>
chip_gen: v7x
topology: tpu7x:2x2x1
jax: 0.10.0
libtpu: 0.0.40
codegen_flags: <defaults>
</compile_context>

<pallas_src>
import math
import numpy as np
import jax
import jax.numpy as jnp
from jax import lax
from jax.experimental import pallas as pl
from jax.experimental.pallas import tpu as pltpu


# ----------------- host-side glue: build the resample matrices --------------

def _sinc(x):
    return np.where(x != 0, np.sin(np.pi * x) / (np.pi * x), 1.0)


def _lanczos(x, a):
    cond = np.logical_and(-a < x, x < a)
    out = np.where(cond, _sinc(x) * _sinc(x / a), 0.0)
    return out / out.sum()


def _ramp(ratio, width):
    n = math.ceil(width / ratio + 1)
    out = np.empty([n], dtype=np.float64)
    cur = 0.0
    for i in range(n):
        out[i] = cur
        cur += ratio
    return np.concatenate([-out[1:][::-1], out])[1:-1]


def _reflect_index(i, size):
    # PyTorch 'reflect' padding index mapping (no edge repeat).
    if i < 0:
        return -i
    if i >= size:
        return 2 * (size - 1) - i
    return i


def _lanczos_conv_matrix(in_size, out_size):
    """1-D lanczos anti-alias conv (reflect pad + valid conv) as a matrix."""
    k = _lanczos(_ramp(out_size / in_size, 2), 2)
    pad = (len(k) - 1) // 2
    M = np.zeros((in_size, in_size), dtype=np.float64)
    for i in range(in_size):
        for t, w in enumerate(k):
            j = _reflect_index(i - pad + t, in_size)
            M[i, j] += w
    return M


def _bicubic_matrix(out_size, in_size):
    """PyTorch F.interpolate(mode='bicubic', align_corners=True) as a matrix."""
    A = -0.75  # PyTorch cubic convolution constant

    def cc1(x):
        return ((A + 2) * x - (A + 3)) * x * x + 1

    def cc2(x):
        return ((A * x - 5 * A) * x + 8 * A) * x - 4 * A

    M = np.zeros((out_size, in_size), dtype=np.float64)
    for i in range(out_size):
        real = i * (in_size - 1) / (out_size - 1) if out_size > 1 else 0.0
        ix = int(np.floor(real))
        t = real - ix
        coeffs = (cc2(t + 1.0), cc1(t), cc1(1.0 - t), cc2(2.0 - t))
        for tap in range(4):
            j = min(max(ix - 1 + tap, 0), in_size - 1)
            M[i, j] += coeffs[tap]
    return M


def _resample_matrix(out_size, in_size):
    """Matrix equivalent of `resample` along one axis."""
    M = _bicubic_matrix(out_size, in_size)
    if out_size < in_size:  # matches `if dh < h:` lanczos anti-alias branch
        M = M @ _lanczos_conv_matrix(in_size, out_size)
    return M


# ----------------------------- Pallas kernel --------------------------------

def _cutout_kernel(a_ref, x_ref, b_ref, o_ref):
    # a_ref: (Kt, S, H) bf16   A matrices for Kt cutouts
    # x_ref: (1, C, H, W) bf16 one image, all channels
    # b_ref: (Kt, S, W) bf16   B matrices for Kt cutouts
    # o_ref: (Kt, 1, C, S, S)  output tile
    Kt = a_ref.shape[0]
    C = x_ref.shape[1]

    def per_cutout(k, carry):
        a = a_ref[k]                      # (S, H) bf16, dynamic leading index
        b = b_ref[k]                      # (S, W) bf16
        for c in range(C):                # C is tiny; keep unrolled
            # First matmul: t = A[k] @ x[c]   -> (S, W), f32 acc on the MXU.
            t = lax.dot_general(
                a, x_ref[0, c],
                dimension_numbers=(((1,), (0,)), ((), ())),
                preferred_element_type=jnp.float32)
            # Second matmul immediately (no scratch round-trip), contracting
            # both operands on W so B needs no in-kernel transpose.
            out_c = lax.dot_general(
                t.astype(jnp.bfloat16), b,
                dimension_numbers=(((1,), (1,)), ((), ())),
                preferred_element_type=jnp.float32)        # (S, S) f32
            # clamp_with_grad forward == clamp(0, 1); clamp in f32, then cast.
            o_ref[k, 0, c] = jnp.clip(out_c, 0.0, 1.0).astype(o_ref.dtype)
        return carry

    lax.fori_loop(0, Kt, per_cutout, 0)


def make_cutouts_pallas(x, A, B, *, cut_block=None, out_dtype=None,
                        vmem_budget_bytes=16 << 20):
    """x: (N, C, H, W); A: (cutn, S, H); B: (cutn, S, W) -> (cutn*N, C, S, S)."""
    N, C, H, W = x.shape
    cutn, S, _ = A.shape
    out_dtype = x.dtype if out_dtype is None else jnp.dtype(out_dtype)
    out_itemsize = jnp.dtype(out_dtype).itemsize

    # bf16 operands (f32 accumulation inside the kernel): ~3x MXU throughput
    # and half the HBM bytes for x / A / B.
    xb = x.astype(jnp.bfloat16)
    Ab = A.astype(jnp.bfloat16)
    Bb = B.astype(jnp.bfloat16)

    def block_bytes(kt):
        # double-buffered A, B, x, out blocks
        return 2 * (kt * S * H * 2 + kt * S * W * 2
                    + C * H * W * 2 + kt * C * S * S * out_itemsize)

    if cut_block is None:
        cut_block = 1
        for kt in (8, 4, 2, 1):
            if cutn % kt == 0 and block_bytes(kt) <= vmem_budget_bytes:
                cut_block = kt
                break
    Kt = cut_block
    assert cutn % Kt == 0, "cut_block must divide cutn"
    KB = cutn // Kt

    # Pick grid order by which operand's redundant re-fetch is cheaper:
    #   image outer / cutouts inner  -> A,B re-fetched (N-1) extra times
    #   cutouts outer / images inner -> x   re-fetched (KB-1) extra times
    ab_bytes = (Ab.size + Bb.size) * 2
    x_bytes = xb.size * 2
    out_bytes = cutn * N * C * S * S * out_itemsize
    cut_inner = (N - 1) * ab_bytes <= (KB - 1) * x_bytes

    if cut_inner:
        grid = (N, KB)
        a_spec = pl.BlockSpec((Kt, S, H), lambda n, kb: (kb, 0, 0))
        x_spec = pl.BlockSpec((1, C, H, W), lambda n, kb: (n, 0, 0, 0))
        b_spec = pl.BlockSpec((Kt, S, W), lambda n, kb: (kb, 0, 0))
        o_spec = pl.BlockSpec((Kt, 1, C, S, S), lambda n, kb: (kb, n, 0, 0, 0))
        bytes_accessed = x_bytes + N * ab_bytes + out_bytes
    else:
        grid = (KB, N)
        a_spec = pl.BlockSpec((Kt, S, H), lambda kb, n: (kb, 0, 0))
        x_spec = pl.BlockSpec((1, C, H, W), lambda kb, n: (n, 0, 0, 0))
        b_spec = pl.BlockSpec((Kt, S, W), lambda kb, n: (kb, 0, 0))
        o_spec = pl.BlockSpec((Kt, 1, C, S, S), lambda kb, n: (kb, n, 0, 0, 0))
        bytes_accessed = KB * x_bytes + ab_bytes + out_bytes

    flops = 2 * cutn * N * C * (S * H * W + S * W * S)

    # Explicit VMEM limit: enough for the double-buffered blocks + headroom,
    # well below v7x's 64 MiB physical ceiling.
    vmem_limit = int(min(max(block_bytes(Kt) + (8 << 20), 16 << 20), 60 << 20))

    out5 = pl.pallas_call(
        _cutout_kernel,
        out_shape=jax.ShapeDtypeStruct((cutn, N, C, S, S), out_dtype),
        grid_spec=pltpu.PrefetchScalarGridSpec(
            num_scalar_prefetch=0,
            grid=grid,
            in_specs=[a_spec, x_spec, b_spec],
            out_specs=o_spec,
        ),
        compiler_params=pltpu.CompilerParams(
            # Every grid step writes a disjoint output block; both axes are
            # safe to parallelize (lets v7x use both TensorCores even at N=1).
            dimension_semantics=("parallel", "parallel"),
            vmem_limit_bytes=vmem_limit),
        cost_estimate=pl.CostEstimate(
            flops=int(flops), transcendentals=0,
            bytes_accessed=int(bytes_accessed)),
    )(Ab, xb, Bb)

    # (cutn, N, C, S, S) -> (cutn*N, C, S, S): row k*N + n, exactly the layout
    # of torch.cat(cutouts, dim=0).
    return out5.reshape(cutn * N, C, S, S)


# --------------------------------- demo --------------------------------------

if __name__ == "__main__":
    # Small, self-consistent configuration (stand-in for CLIP's 224 / cutn=64).
    cut_size, cutn, cut_pow = 8, 4, 1.0
    N, C, H, W = 2, 4, 16, 16

    key = jax.random.PRNGKey(0)
    x = jax.random.uniform(key, (N, C, H, W), dtype=jnp.float32)

    sideY, sideX = H, W
    max_size = min(sideX, sideY)
    min_size = min(sideX, sideY, cut_size)

    # Deterministic host-side stand-in for the torch.rand / torch.randint
    # draws (numpy RNG: no per-cutout device syncs).
    rng = np.random.default_rng(0)
    A_list, B_list = [], []
    for _ in range(cutn):
        r = float(rng.random())
        size = int(r ** cut_pow * (max_size - min_size) + min_size)
        offsetx = int(rng.integers(0, sideX - size + 1))
        offsety = int(rng.integers(0, sideY - size + 1))
        M = _resample_matrix(cut_size, size)           # (cut_size, size)
        Ak = np.zeros((cut_size, sideY), dtype=np.float64)
        Bk = np.zeros((cut_size, sideX), dtype=np.float64)
        Ak[:, offsety:offsety + size] = M              # fold crop offset in
        Bk[:, offsetx:offsetx + size] = M
        A_list.append(Ak)
        B_list.append(Bk)

    A = jnp.asarray(np.stack(A_list), dtype=jnp.float32)   # (cutn, S, H)
    B = jnp.asarray(np.stack(B_list), dtype=jnp.float32)   # (cutn, S, W)

    out = make_cutouts_pallas(x, A, B, cut_block=2)
    out = jax.block_until_ready(out)

    # Pure-JAX f32 reference of the same fused linear map + clamp.
    ref = jnp.einsum("ksh,nchw,ktw->kncst", A, x, B)
    ref = jnp.clip(ref, 0.0, 1.0).reshape(cutn * N, C, cut_size, cut_size)

    assert out.shape == (cutn * N, C, cut_size, cut_size)
    # bf16 operands -> looser tolerance than the f32 reference.
    assert bool(jnp.allclose(out, ref, atol=3e-2, rtol=3e-2)), "mismatch vs reference"
    print("KERNEL_OK")
</pallas_src>

<mosaic_0001>
module attributes {stable_mosaic.version = 11 : i64} {
  func.func @_cutout_kernel(%arg0: i32, %arg1: i32, %arg2: memref<2x8x16xbf16, #tpu.memory_space<vmem>>, %arg3: memref<1x4x16x16xbf16, #tpu.memory_space<vmem>>, %arg4: memref<2x8x16xbf16, #tpu.memory_space<vmem>>, %arg5: memref<2x1x4x8x8xf32, #tpu.memory_space<vmem>>) attributes {dimension_semantics = [#tpu.dimension_semantics<parallel>, #tpu.dimension_semantics<parallel>], iteration_bounds = array<i64: 2, 2>, scalar_prefetch = 0 : i64, scratch_operands = 0 : i64, tpu.core_type = #tpu.core_type<tc>, window_params = [{transform_indices = @transform_0, window_bounds = array<i64: 2, 8, 16>}, {transform_indices = @transform_1, window_bounds = array<i64: 1, 4, 16, 16>}, {transform_indices = @transform_2, window_bounds = array<i64: 2, 8, 16>}, {transform_indices = @transform_3, window_bounds = array<i64: 2, 1, 4, 8, 8>}]} {
    %c0_i32 = arith.constant 0 : i32
    %c2_i32 = arith.constant 2 : i32
    %0 = arith.addi %c0_i32, %c2_i32 : i32
    %c1_i32 = arith.constant 1 : i32
    scf.for %arg6 = %c0_i32 to %0 step %c1_i32  : i32 {
      %1 = arith.index_cast %arg6 : i32 to index
      %c0 = arith.constant 0 : index
      %c0_1 = arith.constant 0 : index
      %2 = vector.load %arg2[%1, %c0, %c0_1] : memref<2x8x16xbf16, #tpu.memory_space<vmem>>, vector<1x8x16xbf16>
      %3 = vector.shape_cast %2 : vector<1x8x16xbf16> to vector<8x16xbf16>
      %4 = arith.index_cast %arg6 : i32 to index
      %c0_2 = arith.constant 0 : index
      %c0_3 = arith.constant 0 : index
      %5 = vector.load %arg4[%4, %c0_2, %c0_3] : memref<2x8x16xbf16, #tpu.memory_space<vmem>>, vector<1x8x16xbf16>
      %6 = vector.shape_cast %5 : vector<1x8x16xbf16> to vector<8x16xbf16>
      %c0_4 = arith.constant 0 : index
      %c0_5 = arith.constant 0 : index
      %c0_6 = arith.constant 0 : index
      %c0_7 = arith.constant 0 : index
      %7 = vector.load %arg3[%c0_4, %c0_5, %c0_6, %c0_7] : memref<1x4x16x16xbf16, #tpu.memory_space<vmem>>, vector<1x1x16x16xbf16>
      %8 = vector.shape_cast %7 : vector<1x1x16x16xbf16> to vector<16x16xbf16>
      %cst = arith.constant dense<0.000000e+00> : vector<8x16xf32>
      %9 = tpu.matmul %3, %8, %cst {dimension_numbers = #tpu.dot_dimension_numbers<[1], [0], [0], [1], [0, 0, 1, 1], [], []>} : vector<8x16xbf16>, vector<16x16xbf16>, vector<8x16xf32> -> vector<8x16xf32>
      %10 = arith.truncf %9 : vector<8x16xf32> to vector<8x16xbf16>
      %cst_8 = arith.constant dense<0.000000e+00> : vector<8x8xf32>
      %11 = tpu.matmul %10, %6, %cst_8 {dimension_numbers = #tpu.dot_dimension_numbers<[1], [1], [0], [0], [0, 0, 1, 0], [], []>} : vector<8x16xbf16>, vector<8x16xbf16>, vector<8x8xf32> -> vector<8x8xf32>
      %cst_9 = arith.constant 0.000000e+00 : f32
      %cst_10 = arith.constant 1.000000e+00 : f32
      %12 = vector.broadcast %cst_9 : f32 to vector<8x8xf32>
      %13 = arith.maximumf %12, %11 : vector<8x8xf32>
      %14 = vector.broadcast %cst_10 : f32 to vector<8x8xf32>
      %15 = arith.minimumf %14, %13 : vector<8x8xf32>
      %16 = arith.index_cast %arg6 : i32 to index
      %c0_11 = arith.constant 0 : index
      %c0_12 = arith.constant 0 : index
      %c0_13 = arith.constant 0 : index
      %c0_14 = arith.constant 0 : index
      %17 = vector.load %arg5[%16, %c0_11, %c0_12, %c0_13, %c0_14] : memref<2x1x4x8x8xf32, #tpu.memory_space<vmem>>, vector<1x1x1x8x8xf32>
      %18 = vector.shape_cast %17 : vector<1x1x1x8x8xf32> to vector<8x8xf32>
      %19 = vector.shape_cast %15 : vector<8x8xf32> to vector<1x1x1x8x8xf32>
      tpu.vector_store %arg5[%16, %c0_11, %c0_12, %c0_13, %c0_14], %19 {strides = array<i32>} : memref<2x1x4x8x8xf32, #tpu.memory_space<vmem>>, vector<1x1x1x8x8xf32>,
      %c0_15 = arith.constant 0 : index
      %c1 = arith.constant 1 : index
      %c0_16 = arith.constant 0 : index
      %c0_17 = arith.constant 0 : index
      %20 = vector.load %arg3[%c0_15, %c1, %c0_16, %c0_17] : memref<1x4x16x16xbf16, #tpu.memory_space<vmem>>, vector<1x1x16x16xbf16>
      %21 = vector.shape_cast %20 : vector<1x1x16x16xbf16> to vector<16x16xbf16>
      %cst_18 = arith.constant dense<0.000000e+00> : vector<8x16xf32>
      %22 = tpu.matmul %3, %21, %cst_18 {dimension_numbers = #tpu.dot_dimension_numbers<[1], [0], [0], [1], [0, 0, 1, 1], [], []>} : vector<8x16xbf16>, vector<16x16xbf16>, vector<8x16xf32> -> vector<8x16xf32>
      %23 = arith.truncf %22 : vector<8x16xf32> to vector<8x16xbf16>
      %cst_19 = arith.constant dense<0.000000e+00> : vector<8x8xf32>
      %24 = tpu.matmul %23, %6, %cst_19 {dimension_numbers = #tpu.dot_dimension_numbers<[1], [1], [0], [0], [0, 0, 1, 0], [], []>} : vector<8x16xbf16>, vector<8x16xbf16>, vector<8x8xf32> -> vector<8x8xf32>
      %cst_20 = arith.constant 0.000000e+00 : f32
      %cst_21 = arith.constant 1.000000e+00 : f32
      %25 = vector.broadcast %cst_20 : f32 to vector<8x8xf32>
      %26 = arith.maximumf %25, %24 : vector<8x8xf32>
      %27 = vector.broadcast %cst_21 : f32 to vector<8x8xf32>
      %28 = arith.minimumf %27, %26 : vector<8x8xf32>
      %29 = arith.index_cast %arg6 : i32 to index
      %c0_22 = arith.constant 0 : index
      %c1_23 = arith.constant 1 : index
      %c0_24 = arith.constant 0 : index
      %c0_25 = arith.constant 0 : index
      %30 = vector.load %arg5[%29, %c0_22, %c1_23, %c0_24, %c0_25] : memref<2x1x4x8x8xf32, #tpu.memory_space<vmem>>, vector<1x1x1x8x8xf32>
      %31 = vector.shape_cast %30 : vector<1x1x1x8x8xf32> to vector<8x8xf32>
      %32 = vector.shape_cast %28 : vector<8x8xf32> to vector<1x1x1x8x8xf32>
      tpu.vector_store %arg5[%29, %c0_22, %c1_23, %c0_24, %c0_25], %32 {strides = array<i32>} : memref<2x1x4x8x8xf32, #tpu.memory_space<vmem>>, vector<1x1x1x8x8xf32>,
      %c0_26 = arith.constant 0 : index
      %c2 = arith.constant 2 : index
      %c0_27 = arith.constant 0 : index
      %c0_28 = arith.constant 0 : index
      %33 = vector.load %arg3[%c0_26, %c2, %c0_27, %c0_28] : memref<1x4x16x16xbf16, #tpu.memory_space<vmem>>, vector<1x1x16x16xbf16>
      %34 = vector.shape_cast %33 : vector<1x1x16x16xbf16> to vector<16x16xbf16>
      %cst_29 = arith.constant dense<0.000000e+00> : vector<8x16xf32>
      %35 = tpu.matmul %3, %34, %cst_29 {dimension_numbers = #tpu.dot_dimension_numbers<[1], [0], [0], [1], [0, 0, 1, 1], [], []>} : vector<8x16xbf16>, vector<16x16xbf16>, vector<8x16xf32> -> vector<8x16xf32>
      %36 = arith.truncf %35 : vector<8x16xf32> to vector<8x16xbf16>
      %cst_30 = arith.constant dense<0.000000e+00> : vector<8x8xf32>
      %37 = tpu.matmul %36, %6, %cst_30 {dimension_numbers = #tpu.dot_dimension_numbers<[1], [1], [0], [0], [0, 0, 1, 0], [], []>} : vector<8x16xbf16>, vector<8x16xbf16>, vector<8x8xf32> -> vector<8x8xf32>
      %cst_31 = arith.constant 0.000000e+00 : f32
      %cst_32 = arith.constant 1.000000e+00 : f32
      %38 = vector.broadcast %cst_31 : f32 to vector<8x8xf32>
      %39 = arith.maximumf %38, %37 : vector<8x8xf32>
      %40 = vector.broadcast %cst_32 : f32 to vector<8x8xf32>
      %41 = arith.minimumf %40, %39 : vector<8x8xf32>
      %42 = arith.index_cast %arg6 : i32 to index
      %c0_33 = arith.constant 0 : index
      %c2_34 = arith.constant 2 : index
      %c0_35 = arith.constant 0 : index
      %c0_36 = arith.constant 0 : index
      %43 = vector.load %arg5[%42, %c0_33, %c2_34, %c0_35, %c0_36] : memref<2x1x4x8x8xf32, #tpu.memory_space<vmem>>, vector<1x1x1x8x8xf32>
      %44 = vector.shape_cast %43 : vector<1x1x1x8x8xf32> to vector<8x8xf32>
      %45 = vector.shape_cast %41 : vector<8x8xf32> to vector<1x1x1x8x8xf32>
      tpu.vector_store %arg5[%42, %c0_33, %c2_34, %c0_35, %c0_36], %45 {strides = array<i32>} : memref<2x1x4x8x8xf32, #tpu.memory_space<vmem>>, vector<1x1x1x8x8xf32>,
      %c0_37 = arith.constant 0 : index
      %c3 = arith.constant 3 : index
      %c0_38 = arith.constant 0 : index
      %c0_39 = arith.constant 0 : index
      %46 = vector.load %arg3[%c0_37, %c3, %c0_38, %c0_39] : memref<1x4x16x16xbf16, #tpu.memory_space<vmem>>, vector<1x1x16x16xbf16>
      %47 = vector.shape_cast %46 : vector<1x1x16x16xbf16> to vector<16x16xbf16>
      %cst_40 = arith.constant dense<0.000000e+00> : vector<8x16xf32>
      %48 = tpu.matmul %3, %47, %cst_40 {dimension_numbers = #tpu.dot_dimension_numbers<[1], [0], [0], [1], [0, 0, 1, 1], [], []>} : vector<8x16xbf16>, vector<16x16xbf16>, vector<8x16xf32> -> vector<8x16xf32>
      %49 = arith.truncf %48 : vector<8x16xf32> to vector<8x16xbf16>
      %cst_41 = arith.constant dense<0.000000e+00> : vector<8x8xf32>
      %50 = tpu.matmul %49, %6, %cst_41 {dimension_numbers = #tpu.dot_dimension_numbers<[1], [1], [0], [0], [0, 0, 1, 0], [], []>} : vector<8x16xbf16>, vector<8x16xbf16>, vector<8x8xf32> -> vector<8x8xf32>
      %cst_42 = arith.constant 0.000000e+00 : f32
      %cst_43 = arith.constant 1.000000e+00 : f32
      %51 = vector.broadcast %cst_42 : f32 to vector<8x8xf32>
      %52 = arith.maximumf %51, %50 : vector<8x8xf32>
      %53 = vector.broadcast %cst_43 : f32 to vector<8x8xf32>
      %54 = arith.minimumf %53, %52 : vector<8x8xf32>
      %55 = arith.index_cast %arg6 : i32 to index
      %c0_44 = arith.constant 0 : index
      %c3_45 = arith.constant 3 : index
      %c0_46 = arith.constant 0 : index
      %c0_47 = arith.constant 0 : index
      %56 = vector.load %arg5[%55, %c0_44, %c3_45, %c0_46, %c0_47] : memref<2x1x4x8x8xf32, #tpu.memory_space<vmem>>, vector<1x1x1x8x8xf32>
      %57 = vector.shape_cast %56 : vector<1x1x1x8x8xf32> to vector<8x8xf32>
      %58 = vector.shape_cast %54 : vector<8x8xf32> to vector<1x1x1x8x8xf32>
      tpu.vector_store %arg5[%55, %c0_44, %c3_45, %c0_46, %c0_47], %58 {strides = array<i32>} : memref<2x1x4x8x8xf32, #tpu.memory_space<vmem>>, vector<1x1x1x8x8xf32>,
    }
    %c2_i32_0 = arith.constant 2 : i32
    return
  }
  func.func @transform_0(%arg0: i32, %arg1: i32) -> (i32, i32, i32) {
    %c0_i32 = arith.constant 0 : i32
    %c0_i32_0 = arith.constant 0 : i32
    %c0_i32_1 = arith.constant 0 : i32
    return %arg1, %c0_i32, %c0_i32_0 : i32, i32, i32
  }
  func.func @transform_1(%arg0: i32, %arg1: i32) -> (i32, i32, i32, i32) {
    %c0_i32 = arith.constant 0 : i32
    %c0_i32_0 = arith.constant 0 : i32
    %c0_i32_1 = arith.constant 0 : i32
    %c0_i32_2 = arith.constant 0 : i32
    return %arg0, %c0_i32, %c0_i32_0, %c0_i32_1 : i32, i32, i32, i32
  }
  func.func @transform_2(%arg0: i32, %arg1: i32) -> (i32, i32, i32) {
    %c0_i32 = arith.constant 0 : i32
    %c0_i32_0 = arith.constant 0 : i32
    %c0_i32_1 = arith.constant 0 : i32
    return %arg1, %c0_i32, %c0_i32_0 : i32, i32, i32
  }
  func.func @transform_3(%arg0: i32, %arg1: i32) -> (i32, i32, i32, i32, i32) {
    %c0_i32 = arith.constant 0 : i32
    %c0_i32_0 = arith.constant 0 : i32
    %c0_i32_1 = arith.constant 0 : i32
    %c0_i32_2 = arith.constant 0 : i32
    return %arg1, %arg0, %c0_i32, %c0_i32_0, %c0_i32_1 : i32, i32, i32, i32, i32
  }
}

</mosaic_0001>

<llo_original>
// kernel: tpu_custom_call.1
$region0: #{tpu_custom_call.1}
  #allocation0 [shape = 'u32[]', space=smem, size = 0x4, offset = 0x4, fixed_abs, tag = 'smem constant byte address 0x4 - core index']
  #allocation1 [shape = 'u32[144,128]{1,0:T(1,128)}', space=vmem, size = 0x12000, scoped, tag = 'internal scratch']
  #allocation9 [shape = 's32[]', space=sflag, size = 0x4, offset = 0, fixed_abs, tag = 'sflag constant byte address 0x0 - dummy sync flag']
  %s0 = inlined_call_operand.hbm [shape: bf16[4,8,16], index: 0, kind: input, shape index: {}]
  %s1 = inlined_call_operand.hbm [shape: bf16[2,4,16,16], index: 1, kind: input, shape index: {}]
  %s2 = inlined_call_operand.hbm [shape: bf16[4,8,16], index: 2, kind: input, shape index: {}]
  %s3 = inlined_call_operand.hbm [shape: f32[4,2,4,8,8], index: 3, kind: output, shape index: {}]
  %s4 = sld [smem:[#allocation0]]
  $region64: #{tpu_custom_call.1} parent=0
    _
  %s6 = ssub.s32 1, %s4
  %s7 = scalar_select 0, %s6, %s4
  $region1: #{tpu_custom_call.1} parent=0
    #allocation2 [shape = 'u8[8192]{0}', space=vmem, size = 0x2000, scoped, tag = 'input window, operand 0']
    #allocation3 [shape = 's32[2]{0}', space=sflag, size = 0x8, scoped, tag = 'scoped memory for tpu_custom_call.1']
    #allocation4 [shape = 's32[2]{0}', space=sflag, size = 0x8, scoped, tag = 'scoped memory for tpu_custom_call.1']
    #allocation5 [shape = 'u8[32768]{0}', space=vmem, size = 0x8000, scoped, tag = 'input window, operand 1']
    #allocation6 [shape = 's32[2]{0}', space=sflag, size = 0x8, scoped, tag = 'scoped memory for tpu_custom_call.1']
    #allocation7 [shape = 'u8[8192]{0}', space=vmem, size = 0x2000, scoped, tag = 'input window, operand 2']
    #allocation8 [shape = 'u8[65536]{0}', space=vmem, size = 0x10000, scoped, tag = 'output window, operand 0']
    %8 = vsyncpa [#allocation3], 0
    %s9 = scalar_lea.sflag [#allocation3], 1
    %10 = vsyncpa %s9, 0
    %11 = vsyncpa [#allocation6], 0
    %s12 = scalar_lea.sflag [#allocation6], 1
    %13 = vsyncpa %s12, 0
    %14 = vsyncpa [#allocation4], 0
    %s15 = scalar_lea.sflag [#allocation4], 1
    %16 = vsyncpa %s15, 0
    loop: start=0, step=1, limit=6
    $region2: #{tpu_custom_call.1} parent=1 // loop_pre_header
      _
    $region3: #{tpu_custom_call.1} parent=1 // loop_header
      %s18 = sphi 0, %s22
      %p19 = scmp.ge.s32.totalorder %s18, 6
      %s25 = sphi 0, %s37
      %s26 = sphi 0, %s33
      %s27 = sphi 0, %s25
      %s28 = sphi 0, %s26
      %s29 = sphi 0, %s27
      %s30 = sphi 0, %s28
      %s40 = sphi 0, %s42
      %s43 = sphi 0, %s40
      %s44 = sphi 0, %s43
      %s60 = sphi 0, %s44
      %s66 = sphi 0, %s68
      %s69 = sphi 0, %s66
      %s70 = sphi 0, %s69
      %s86 = sphi 0, %s70
      %s92 = sphi 0, %s94
      %s95 = sphi 0, %s92
      %s96 = sphi 0, %s95
      %s112 = sphi 0, %s96
      %s120 = sphi 0, %s122
      %s123 = sphi 0, %s120
      %s124 = sphi 0, %s123
      %s140 = sphi 0, %s124
    $region4: #{tpu_custom_call.1} parent=1 // loop_header_branch
      %21 = sbr.rel (%p19) target = $region8
    $region5: #{tpu_custom_call.1} parent=1 // loop_body
      %s23 = ssub.s32 %s18, 1
      %s24 = ssub.s32 %s18, 2
      %s31 = sadd.s32 1, %s26
      %p32 = scmp.ge.s32.totalorder %s31, 2
      %s33 = scalar_select %p32, 0, %s31
      %s34 = sadd.s32 1, %s25
      %s35 = scalar_select %p32, %s34, %s25
      %p36 = scmp.ge.s32.totalorder %s35, 2
      %s37 = scalar_select %p36, 0, %s35
      %s38 = ssub.s32 %s26, %s33
      %p39 = scmp.eq.s32.totalorder %s38, 0
      %s41 = sadd.s32 %s40, 1
      %s42 = scalar_select %p39, %s40, %s41
      %p45 = pneg %p39
      %p46 = scmp.eq.s32.totalorder %s18, 3
      %p47 = por %p45, %p46
      %p48 = scmp.ne.s32.totalorder %s40, %s43
      %p49 = scmp.eq.s32.totalorder %s18, 0
      %p50 = por %p48, %p49
      %p51 = scmp.ne.s32.totalorder %s40, %s43
      %p52 = scmp.eq.s32.totalorder %s23, 3
      %p53 = por %p51, %p52
      %p54 = scmp.ne.s32.totalorder %s43, %s44
      %p55 = scmp.eq.s32.totalorder %s23, 0
      %p56 = por %p54, %p55
      %p57 = scmp.ne.s32.totalorder %s43, %s44
      %p58 = scmp.eq.s32.totalorder %s24, 3
      %p59 = por %p57, %p58
      %p61 = scmp.ne.s32.totalorder %s44, %s60
      %p62 = scmp.eq.s32.totalorder %s24, 0
      %p63 = por %p61, %p62
      %s64 = ssub.s32 %s25, %s37
      %p65 = scmp.eq.s32.totalorder %s64, 0
      %s67 = sadd.s32 %s66, 1
      %s68 = scalar_select %p65, %s66, %s67
      %p71 = pneg %p65
      %p72 = scmp.eq.s32.totalorder %s18, 3
      %p73 = por %p71, %p72
      %p74 = scmp.ne.s32.totalorder %s66, %s69
      %p75 = scmp.eq.s32.totalorder %s18, 0
      %p76 = por %p74, %p75
      %p77 = scmp.ne.s32.totalorder %s66, %s69
      %p78 = scmp.eq.s32.totalorder %s23, 3
      %p79 = por %p77, %p78
      %p80 = scmp.ne.s32.totalorder %s69, %s70
      %p81 = scmp.eq.s32.totalorder %s23, 0
      %p82 = por %p80, %p81
      %p83 = scmp.ne.s32.totalorder %s69, %s70
      %p84 = scmp.eq.s32.totalorder %s24, 3
      %p85 = por %p83, %p84
      %p87 = scmp.ne.s32.totalorder %s70, %s86
      %p88 = scmp.eq.s32.totalorder %s24, 0
      %p89 = por %p87, %p88
      %s90 = ssub.s32 %s26, %s33
      %p91 = scmp.eq.s32.totalorder %s90, 0
      %s93 = sadd.s32 %s92, 1
      %s94 = scalar_select %p91, %s92, %s93
      %p97 = pneg %p91
      %p98 = scmp.eq.s32.totalorder %s18, 3
      %p99 = por %p97, %p98
      %p100 = scmp.ne.s32.totalorder %s92, %s95
      %p101 = scmp.eq.s32.totalorder %s18, 0
      %p102 = por %p100, %p101
      %p103 = scmp.ne.s32.totalorder %s92, %s95
      %p104 = scmp.eq.s32.totalorder %s23, 3
      %p105 = por %p103, %p104
      %p106 = scmp.ne.s32.totalorder %s95, %s96
      %p107 = scmp.eq.s32.totalorder %s23, 0
      %p108 = por %p106, %p107
      %p109 = scmp.ne.s32.totalorder %s95, %s96
      %p110 = scmp.eq.s32.totalorder %s24, 3
      %p111 = por %p109, %p110
      %p113 = scmp.ne.s32.totalorder %s96, %s112
      %p114 = scmp.eq.s32.totalorder %s24, 0
      %p115 = por %p113, %p114
      %s116 = ssub.s32 %s26, %s33
      %s117 = ssub.s32 %s25, %s37
      %s118 = sor.u32 %s116, %s117
      %p119 = scmp.eq.s32.totalorder %s118, 0
      %s121 = sadd.s32 %s120, 1
      %s122 = scalar_select %p119, %s120, %s121
      %p125 = pneg %p119
      %p126 = scmp.eq.s32.totalorder %s18, 3
      %p127 = por %p125, %p126
      %p128 = scmp.ne.s32.totalorder %s120, %s123
      %p129 = scmp.eq.s32.totalorder %s18, 0
      %p130 = por %p128, %p129
      %p131 = scmp.ne.s32.totalorder %s120, %s123
      %p132 = scmp.eq.s32.totalorder %s23, 3
      %p133 = por %p131, %p132
      %p134 = scmp.ne.s32.totalorder %s123, %s124
      %p135 = scmp.eq.s32.totalorder %s23, 0
      %p136 = por %p134, %p135
      %p137 = scmp.ne.s32.totalorder %s123, %s124
      %p138 = scmp.eq.s32.totalorder %s24, 3
      %p139 = por %p137, %p138
      %p141 = scmp.ne.s32.totalorder %s124, %s140
      %p142 = scmp.eq.s32.totalorder %s24, 0
      %p143 = por %p141, %p142
      %p144 = scmp.le.s32.totalorder 1, %s18
      %p145 = scmp.lt.s32.totalorder %s18, 5
      %p146 = pnand %p144, %p145
      %p147 = pneg %p146
      // Predicated region
      $region9: #{tpu_custom_call.1} parent=5 // pred_check
        _
      $region10: #{tpu_custom_call.1} parent=5 // pred_check_branch
        %149 = sbr.rel (%p146) target = $region12
      $region11: #{tpu_custom_call.1} parent=5 // pred_region
        %s150 = ssub.s32 %s18, 1
      $region12: #{tpu_custom_call.1} parent=5 // pred_fallthru
        _
      %p151 = scmp.lt.s32.totalorder %s18, 4
      // Predicated region
      $region13: #{tpu_custom_call.1} parent=5 // pred_check
        %p152 = pneg %p151
      $region14: #{tpu_custom_call.1} parent=5 // pred_check_branch
        %154 = sbr.rel (%p152) target = $region16
      $region15: #{tpu_custom_call.1} parent=5 // pred_region
        // Predicated region
        $region17: #{tpu_custom_call.1} parent=15 // pred_check
          %p155 = pneg %p50
        $region18: #{tpu_custom_call.1} parent=15 // pred_check_branch
          %157 = sbr.rel (%p155) target = $region20
        $region19: #{tpu_custom_call.1} parent=15 // pred_region
          %s158 = sand.u32 %s40, 1
          %s159 = scalar_lea.sflag [#allocation3], %s158
          %s160 = sand.u32 %s40, 1
          %s161 = smul.addr %s160, 8
          %s162 = scalar_lea.vmem [#allocation2], %s161
          %s163 = smul.u32 2, %s26
          %s165 = ssub.s32 128, 128
          %166 = vsyncadd %s159, %s165
          %s167 = smul.addr %s163, 64
          %s168 = scalar_lea.hbm %s0, %s167
          %s169 = sshll.u32 %s162, 4
          %s170 = int_to_ptr.vmem [resolvable:$true] %s169
          %175 = dma.hbm_to_vmem [thread:$0]  %s168, 128, %s170, %s159, 64, 64, 4
        $region20: #{tpu_custom_call.1} parent=15 // pred_fallthru
          _
        // Predicated region
        $region21: #{tpu_custom_call.1} parent=15 // pred_check
          %p176 = pneg %p76
        $region22: #{tpu_custom_call.1} parent=15 // pred_check_branch
          %178 = sbr.rel (%p176) target = $region24
        $region23: #{tpu_custom_call.1} parent=15 // pred_region
          %s179 = sand.u32 %s18, 1
          %s180 = scalar_lea.sflag [#allocation6], %s179
          %s181 = sand.u32 %s66, 1
          %s182 = smul.addr %s181, 32
          %s183 = scalar_lea.vmem [#allocation5], %s182
          %s185 = ssub.s32 512, 512
          %186 = vsyncadd %s180, %s185
          %s187 = smul.addr %s25, 8
          %s188 = smul.addr %s187, 64
          %s189 = scalar_lea.hbm %s1, %s188
          %s190 = sshll.u32 %s183, 4
          %s191 = int_to_ptr.vmem [resolvable:$true] %s190
          %196 = dma.hbm_to_vmem [thread:$0]  %s189, 512, %s191, %s180, 64, 64, 4
        $region24: #{tpu_custom_call.1} parent=15 // pred_fallthru
          _
        // Predicated region
        $region25: #{tpu_custom_call.1} parent=15 // pred_check
          %p197 = pneg %p102
        $region26: #{tpu_custom_call.1} parent=15 // pred_check_branch
          %199 = sbr.rel (%p197) target = $region28
        $region27: #{tpu_custom_call.1} parent=15 // pred_region
          %s200 = sand.u32 %s18, 1
          %s201 = scalar_lea.sflag [#allocation6], %s200
          %s202 = sand.u32 %s92, 1
          %s203 = smul.addr %s202, 8
          %s204 = scalar_lea.vmem [#allocation7], %s203
          %s205 = smul.u32 2, %s26
          %s207 = ssub.s32 128, 128
          %208 = vsyncadd %s201, %s207
          %s209 = smul.addr %s205, 64
          %s210 = scalar_lea.hbm %s2, %s209
          %s211 = sshll.u32 %s204, 4
          %s212 = int_to_ptr.vmem [resolvable:$true] %s211
          %217 = dma.hbm_to_vmem [thread:$0]  %s210, 128, %s212, %s201, 64, 64, 4
        $region28: #{tpu_custom_call.1} parent=15 // pred_fallthru
          _
      $region16: #{tpu_custom_call.1} parent=5 // pred_fallthru
        _
      %p218 = scmp.le.s32.totalorder 1, %s18
      %p219 = scmp.lt.s32.totalorder %s18, 5
      %p220 = pnand %p218, %p219
      %p221 = pneg %p220
      // Predicated region
      $region29: #{tpu_custom_call.1} parent=5 // pred_check
        _
      $region30: #{tpu_custom_call.1} parent=5 // pred_check_branch
        %223 = sbr.rel (%p220) target = $region32
      $region31: #{tpu_custom_call.1} parent=5 // pred_region
        %s224 = ssub.s32 %s18, 1
        %s225 = sand.u32 %s43, 1
        %s226 = scalar_lea.sflag [#allocation3], %s225
        %s227 = sand.u32 %s43, 1
        %s228 = smul.addr %s227, 8
        %s229 = scalar_lea.vmem [#allocation2], %s228
        // Predicated region
        $region33: #{tpu_custom_call.1} parent=31 // pred_check
          %p230 = pneg %p56
        $region34: #{tpu_custom_call.1} parent=31 // pred_check_branch
          %232 = sbr.rel (%p230) target = $region36
        $region35: #{tpu_custom_call.1} parent=31 // pred_region
          %233 = dma.done %s226, 128
        $region36: #{tpu_custom_call.1} parent=31 // pred_fallthru
          _
        %s234 = sand.u32 %s23, 1
        %s235 = scalar_lea.sflag [#allocation6], %s234
        %s236 = sand.u32 %s69, 1
        %s237 = smul.addr %s236, 32
        %s238 = scalar_lea.vmem [#allocation5], %s237
        // Predicated region
        $region37: #{tpu_custom_call.1} parent=31 // pred_check
          %p239 = pneg %p82
        $region38: #{tpu_custom_call.1} parent=31 // pred_check_branch
          %241 = sbr.rel (%p239) target = $region40
        $region39: #{tpu_custom_call.1} parent=31 // pred_region
          %242 = dma.done %s235, 512
        $region40: #{tpu_custom_call.1} parent=31 // pred_fallthru
          _
        %s243 = sand.u32 %s23, 1
        %s244 = scalar_lea.sflag [#allocation6], %s243
        %s245 = sand.u32 %s95, 1
        %s246 = smul.addr %s245, 8
        %s247 = scalar_lea.vmem [#allocation7], %s246
        // Predicated region
        $region41: #{tpu_custom_call.1} parent=31 // pred_check
          %p248 = pneg %p108
        $region42: #{tpu_custom_call.1} parent=31 // pred_check_branch
          %250 = sbr.rel (%p248) target = $region44
        $region43: #{tpu_custom_call.1} parent=31 // pred_region
          %251 = dma.done %s244, 128
        $region44: #{tpu_custom_call.1} parent=31 // pred_fallthru
          _
        %s252 = sand.u32 %s43, 1
        %s253 = scalar_lea.sflag [#allocation3], %s252
        %s254 = sand.u32 %s43, 1
        %s255 = smul.addr %s254, 8
        %s256 = scalar_lea.vmem [#allocation2], %s255
        %p257 = pneg %p56
        %p258 = pneg %p53
        %s259 = sand.u32 %s23, 1
        %s260 = scalar_lea.sflag [#allocation6], %s259
        %s261 = sand.u32 %s69, 1
        %s262 = smul.addr %s261, 32
        %s263 = scalar_lea.vmem [#allocation5], %s262
        %p264 = pneg %p82
        %p265 = pneg %p79
        %s266 = sand.u32 %s23, 1
        %s267 = scalar_lea.sflag [#allocation6], %s266
        %s268 = sand.u32 %s95, 1
        %s269 = smul.addr %s268, 8
        %s270 = scalar_lea.vmem [#allocation7], %s269
        %p271 = pneg %p108
        %p272 = pneg %p105
        %p273 = pneg %p136
        %p274 = pneg %p133
        %s275 = sand.u32 %s123, 1
        %s276 = scalar_lea.sflag [#allocation4], %s275
        %s277 = sand.u32 %s123, 1
        %s278 = smul.addr %s277, 64
        %s279 = scalar_lea.vmem [#allocation8], %s278
        %s280 = smul.u32 2, %s28
        %s281 = smul.u32 2, %s28
        %s282 = smul.u32 2, %s28
        loop: start=0, step=1, limit=2
        $region45: #{tpu_custom_call.1} parent=31 // loop_pre_header
          _
        $region46: #{tpu_custom_call.1} parent=31 // loop_header
          %s285 = sphi 0, %s289
          %p286 = scmp.ge.s32.totalorder %s285, 2
        $region47: #{tpu_custom_call.1} parent=31 // loop_header_branch
          %288 = sbr.rel (%p286) target = $region51
        $region48: #{tpu_custom_call.1} parent=31 // loop_body
          %s290 = smul.addr %s285, 4
          %s291 = scalar_lea.vmem %s229, %s290 [#allocation2]
          %v292 = vld [vmem:[%s291] sm:$0xf]
          %s293 = smul.addr %s285, 4
          %s294 = scalar_lea.vmem %s247, %s293 [#allocation7]
          %v295 = vld [vmem:[%s294] sm:$0xf]
          %v296 = vld [vmem:[%s238] sm:$0xf]
          %v297 = vld [vmem:[%s238 + $0x4] sm:$0xf]
          %v300 = vunpack.c.l.b16 %v296
          %v301 = vunpack.c.l.b16 %v297
          %v302 = vpack.c.b16 %v301, %v300
          %vm304 = vcmask 130048
          %v306 = vsel %vm304, %v292, 0
          %308 = vmatprep.subr.bf16.mxu0 0
          %309 = vmatpush1.bf16.msra.mxu0 %v302
          %310 = vmatprep.subr.bf16.mxu0 0
          %311 = vmatpush1.bf16.msra.mxu0 0
          %312 = vmatprep.subr.bf16.mxu0 0
          %313 = vmatpush1.bf16.msra.mxu0 0
          %314 = vmatprep.subr.bf16.mxu0 0
          %315 = vmatpush1.bf16.msra.mxu0 0
          %316 = vmatprep.subr.bf16.mxu0 0
          %317 = vmatpush1.bf16.msra.mxu0 0
          %318 = vmatprep.subr.bf16.mxu0 0
          %319 = vmatpush1.bf16.msra.mxu0 0
          %320 = vmatprep.subr.bf16.mxu0 0
          %321 = vmatpush1.bf16.msra.mxu0 0
          %322 = vmatprep.subr.bf16.mxu0 0
          %323 = vmatpush1.bf16.msra.mxu0 0
          %324 = vmatprep.subr.bf16.mxu0 0
          %325 = vmatpush1.bf16.msra.mxu0 0
          %326 = vmatprep.subr.bf16.mxu0 0
          %327 = vmatpush1.bf16.msra.mxu0 0
          %328 = vmatprep.subr.bf16.mxu0 0
          %329 = vmatpush1.bf16.msra.mxu0 0
          %330 = vmatprep.subr.bf16.mxu0 0
          %331 = vmatpush1.bf16.msra.mxu0 0
          %332 = vmatprep.subr.bf16.mxu0 0
          %333 = vmatpush1.bf16.msra.mxu0 0
          %334 = vmatprep.subr.bf16.mxu0 0
          %335 = vmatpush1.bf16.msra.mxu0 0
          %336 = vmatprep.subr.bf16.mxu0 0
          %337 = vmatpush1.bf16.msra.mxu0 0
          %338 = vmatprep.subr.bf16.mxu0 0
          %339 = vmatpush1.bf16.msra.mxu0 0
          %340 = vmatprep.mubr.bf16.mxu0 0
          %341 = vmatmul.mubr.bf16.gmra.mrb[0].mxu0 %v306
          %v342 = vpop.f32.mrb[0].mxu0
          %v343 = vadd.f32 0.0, %v342
          %v344 = vpop.f32.mrb[0].mxu0
          %v345 = vpop.f32.mrb[0].mxu0
          %v346 = vpop.f32.mrb[0].mxu0
          %347 = vdwg.mxu0
          %v348 = vpack.c.bf16 %v343, %v343
          %v350 = vsel %vm304, %v348, 0
          %v353 = vsel %vm304, %v295, 0
          %355 = vmatprep.subr.bf16.mxu0 0
          %356 = vmatpush1.bf16.xpose.msra.mxu0 %v353
          %357 = vmatprep.subr.bf16.mxu0 0
          %358 = vmatpush1.bf16.xpose.msra.mxu0 0
          %359 = vmatprep.subr.bf16.mxu0 0
          %360 = vmatpush1.bf16.xpose.msra.mxu0 0
          %361 = vmatprep.subr.bf16.mxu0 0
          %362 = vmatpush1.bf16.xpose.msra.mxu0 0
          %363 = vmatprep.subr.bf16.mxu0 0
          %364 = vmatpush1.bf16.xpose.msra.mxu0 0
          %365 = vmatprep.subr.bf16.mxu0 0
          %366 = vmatpush1.bf16.xpose.msra.mxu0 0
          %367 = vmatprep.subr.bf16.mxu0 0
          %368 = vmatpush1.bf16.xpose.msra.mxu0 0
          %369 = vmatprep.subr.bf16.mxu0 0
          %370 = vmatpush1.bf16.xpose.msra.mxu0 0
          %371 = vmatprep.subr.bf16.mxu0 0
          %372 = vmatpush1.bf16.xpose.msra.mxu0 0
          %373 = vmatprep.subr.bf16.mxu0 0
          %374 = vmatpush1.bf16.xpose.msra.mxu0 0
          %375 = vmatprep.subr.bf16.mxu0 0
          %376 = vmatpush1.bf16.xpose.msra.mxu0 0
          %377 = vmatprep.subr.bf16.mxu0 0
          %378 = vmatpush1.bf16.xpose.msra.mxu0 0
          %379 = vmatprep.subr.bf16.mxu0 0
          %380 = vmatpush1.bf16.xpose.msra.mxu0 0
          %381 = vmatprep.subr.bf16.mxu0 0
          %382 = vmatpush1.bf16.xpose.msra.mxu0 0
          %383 = vmatprep.subr.bf16.mxu0 0
          %384 = vmatpush1.bf16.xpose.msra.mxu0 0
          %385 = vmatprep.subr.bf16.mxu0 0
          %386 = vmatpush1.bf16.xpose.msra.mxu0 0
          %387 = vmatprep.mubr.bf16.mxu0 0
          %388 = vmatmul.mubr.bf16.gmra.mrb[0].mxu0 %v350
          %v389 = vpop.f32.mrb[0].mxu0
          %v390 = vadd.f32 0.0, %v389
          %v391 = vpop.f32.mrb[0].mxu0
          %v392 = vpop.f32.mrb[0].mxu0
          %v393 = vpop.f32.mrb[0].mxu0
          %394 = vdwg.mxu0
          %v395 = vmax.f32 %v390, 0.0
          %v396 = vmin.f32 %v395, 1.0
          %s397 = smul.u32 %s285, 32
          %s398 = scalar_lea.vmem %s279, %s397 [#allocation8]
          %vm399 = vcmask 64512
          %400 = vst.msk [vmem:[%s398] sm:$0xff] %vm399, %v396
          %s401 = scalar_lea.vmem %s238, 8 [#allocation5]
          %v402 = vld [vmem:[%s401] sm:$0xf]
          %v403 = vld [vmem:[%s401 + $0x4] sm:$0xf]
          %v406 = vunpack.c.l.b16 %v402
          %v407 = vunpack.c.l.b16 %v403
          %v408 = vpack.c.b16 %v407, %v406
          %410 = vmatprep.subr.bf16.mxu0 0
          %411 = vmatpush1.bf16.msra.mxu0 %v408
          %412 = vmatprep.subr.bf16.mxu0 0
          %413 = vmatpush1.bf16.msra.mxu0 0
          %414 = vmatprep.subr.bf16.mxu0 0
          %415 = vmatpush1.bf16.msra.mxu0 0
          %416 = vmatprep.subr.bf16.mxu0 0
          %417 = vmatpush1.bf16.msra.mxu0 0
          %418 = vmatprep.subr.bf16.mxu0 0
          %419 = vmatpush1.bf16.msra.mxu0 0
          %420 = vmatprep.subr.bf16.mxu0 0
          %421 = vmatpush1.bf16.msra.mxu0 0
          %422 = vmatprep.subr.bf16.mxu0 0
          %423 = vmatpush1.bf16.msra.mxu0 0
          %424 = vmatprep.subr.bf16.mxu0 0
          %425 = vmatpush1.bf16.msra.mxu0 0
          %426 = vmatprep.subr.bf16.mxu0 0
          %427 = vmatpush1.bf16.msra.mxu0 0
          %428 = vmatprep.subr.bf16.mxu0 0
          %429 = vmatpush1.bf16.msra.mxu0 0
          %430 = vmatprep.subr.bf16.mxu0 0
          %431 = vmatpush1.bf16.msra.mxu0 0
          %432 = vmatprep.subr.bf16.mxu0 0
          %433 = vmatpush1.bf16.msra.mxu0 0
          %434 = vmatprep.subr.bf16.mxu0 0
          %435 = vmatpush1.bf16.msra.mxu0 0
          %436 = vmatprep.subr.bf16.mxu0 0
          %437 = vmatpush1.bf16.msra.mxu0 0
          %438 = vmatprep.subr.bf16.mxu0 0
          %439 = vmatpush1.bf16.msra.mxu0 0
          %440 = vmatprep.subr.bf16.mxu0 0
          %441 = vmatpush1.bf16.msra.mxu0 0
          %442 = vmatprep.mubr.bf16.mxu0 0
          %443 = vmatmul.mubr.bf16.gmra.mrb[0].mxu0 %v306
          %v444 = vpop.f32.mrb[0].mxu0
          %v445 = vadd.f32 0.0, %v444
          %v446 = vpop.f32.mrb[0].mxu0
          %v447 = vpop.f32.mrb[0].mxu0
          %v448 = vpop.f32.mrb[0].mxu0
          %449 = vdwg.mxu0
          %v450 = vpack.c.bf16 %v445, %v445
          %v452 = vsel %vm304, %v450, 0
          %454 = vmatprep.subr.bf16.mxu0 0
          %455 = vmatpush1.bf16.xpose.msra.mxu0 %v353
          %456 = vmatprep.subr.bf16.mxu0 0
          %457 = vmatpush1.bf16.xpose.msra.mxu0 0
          %458 = vmatprep.subr.bf16.mxu0 0
          %459 = vmatpush1.bf16.xpose.msra.mxu0 0
          %460 = vmatprep.subr.bf16.mxu0 0
          %461 = vmatpush1.bf16.xpose.msra.mxu0 0
          %462 = vmatprep.subr.bf16.mxu0 0
          %463 = vmatpush1.bf16.xpose.msra.mxu0 0
          %464 = vmatprep.subr.bf16.mxu0 0
          %465 = vmatpush1.bf16.xpose.msra.mxu0 0
          %466 = vmatprep.subr.bf16.mxu0 0
          %467 = vmatpush1.bf16.xpose.msra.mxu0 0
          %468 = vmatprep.subr.bf16.mxu0 0
          %469 = vmatpush1.bf16.xpose.msra.mxu0 0
          %470 = vmatprep.subr.bf16.mxu0 0
          %471 = vmatpush1.bf16.xpose.msra.mxu0 0
          %472 = vmatprep.subr.bf16.mxu0 0
          %473 = vmatpush1.bf16.xpose.msra.mxu0 0
          %474 = vmatprep.subr.bf16.mxu0 0
          %475 = vmatpush1.bf16.xpose.msra.mxu0 0
          %476 = vmatprep.subr.bf16.mxu0 0
          %477 = vmatpush1.bf16.xpose.msra.mxu0 0
          %478 = vmatprep.subr.bf16.mxu0 0
          %479 = vmatpush1.bf16.xpose.msra.mxu0 0
          %480 = vmatprep.subr.bf16.mxu0 0
          %481 = vmatpush1.bf16.xpose.msra.mxu0 0
          %482 = vmatprep.subr.bf16.mxu0 0
          %483 = vmatpush1.bf16.xpose.msra.mxu0 0
          %484 = vmatprep.subr.bf16.mxu0 0
          %485 = vmatpush1.bf16.xpose.msra.mxu0 0
          %486 = vmatprep.mubr.bf16.mxu0 0
          %487 = vmatmul.mubr.bf16.gmra.mrb[0].mxu0 %v452
          %v488 = vpop.f32.mrb[0].mxu0
          %v489 = vadd.f32 0.0, %v488
          %v490 = vpop.f32.mrb[0].mxu0
          %v491 = vpop.f32.mrb[0].mxu0
          %v492 = vpop.f32.mrb[0].mxu0
          %493 = vdwg.mxu0
          %v494 = vmax.f32 %v489, 0.0
          %v495 = vmin.f32 %v494, 1.0
          %s496 = sadd.s32 8, %s397
          %s497 = scalar_lea.vmem %s279, %s496 [#allocation8]
          %498 = vst.msk [vmem:[%s497] sm:$0xff] %vm399, %v495
          %s499 = scalar_lea.vmem %s238, 16 [#allocation5]
          %v500 = vld [vmem:[%s499] sm:$0xf]
          %v501 = vld [vmem:[%s499 + $0x4] sm:$0xf]
          %v504 = vunpack.c.l.b16 %v500
          %v505 = vunpack.c.l.b16 %v501
          %v506 = vpack.c.b16 %v505, %v504
          %508 = vmatprep.subr.bf16.mxu0 0
          %509 = vmatpush1.bf16.msra.mxu0 %v506
          %510 = vmatprep.subr.bf16.mxu0 0
          %511 = vmatpush1.bf16.msra.mxu0 0
          %512 = vmatprep.subr.bf16.mxu0 0
          %513 = vmatpush1.bf16.msra.mxu0 0
          %514 = vmatprep.subr.bf16.mxu0 0
          %515 = vmatpush1.bf16.msra.mxu0 0
          %516 = vmatprep.subr.bf16.mxu0 0
          %517 = vmatpush1.bf16.msra.mxu0 0
          %518 = vmatprep.subr.bf16.mxu0 0
          %519 = vmatpush1.bf16.msra.mxu0 0
          %520 = vmatprep.subr.bf16.mxu0 0
          %521 = vmatpush1.bf16.msra.mxu0 0
          %522 = vmatprep.subr.bf16.mxu0 0
          %523 = vmatpush1.bf16.msra.mxu0 0
          %524 = vmatprep.subr.bf16.mxu0 0
          %525 = vmatpush1.bf16.msra.mxu0 0
          %526 = vmatprep.subr.bf16.mxu0 0
          %527 = vmatpush1.bf16.msra.mxu0 0
          %528 = vmatprep.subr.bf16.mxu0 0
          %529 = vmatpush1.bf16.msra.mxu0 0
          %530 = vmatprep.subr.bf16.mxu0 0
          %531 = vmatpush1.bf16.msra.mxu0 0
          %532 = vmatprep.subr.bf16.mxu0 0
          %533 = vmatpush1.bf16.msra.mxu0 0
          %534 = vmatprep.subr.bf16.mxu0 0
          %535 = vmatpush1.bf16.msra.mxu0 0
          %536 = vmatprep.subr.bf16.mxu0 0
          %537 = vmatpush1.bf16.msra.mxu0 0
          %538 = vmatprep.subr.bf16.mxu0 0
          %539 = vmatpush1.bf16.msra.mxu0 0
          %540 = vmatprep.mubr.bf16.mxu0 0
          %541 = vmatmul.mubr.bf16.gmra.mrb[0].mxu0 %v306
          %v542 = vpop.f32.mrb[0].mxu0
          %v543 = vadd.f32 0.0, %v542
          %v544 = vpop.f32.mrb[0].mxu0
          %v545 = vpop.f32.mrb[0].mxu0
          %v546 = vpop.f32.mrb[0].mxu0
          %547 = vdwg.mxu0
          %v548 = vpack.c.bf16 %v543, %v543
          %v550 = vsel %vm304, %v548, 0
          %552 = vmatprep.subr.bf16.mxu0 0
          %553 = vmatpush1.bf16.xpose.msra.mxu0 %v353
          %554 = vmatprep.subr.bf16.mxu0 0
          %555 = vmatpush1.bf16.xpose.msra.mxu0 0
          %556 = vmatprep.subr.bf16.mxu0 0
          %557 = vmatpush1.bf16.xpose.msra.mxu0 0
          %558 = vmatprep.subr.bf16.mxu0 0
          %559 = vmatpush1.bf16.xpose.msra.mxu0 0
          %560 = vmatprep.subr.bf16.mxu0 0
          %561 = vmatpush1.bf16.xpose.msra.mxu0 0
          %562 = vmatprep.subr.bf16.mxu0 0
          %563 = vmatpush1.bf16.xpose.msra.mxu0 0
          %564 = vmatprep.subr.bf16.mxu0 0
          %565 = vmatpush1.bf16.xpose.msra.mxu0 0
          %566 = vmatprep.subr.bf16.mxu0 0
          %567 = vmatpush1.bf16.xpose.msra.mxu0 0
          %568 = vmatprep.subr.bf16.mxu0 0
          %569 = vmatpush1.bf16.xpose.msra.mxu0 0
          %570 = vmatprep.subr.bf16.mxu0 0
          %571 = vmatpush1.bf16.xpose.msra.mxu0 0
          %572 = vmatprep.subr.bf16.mxu0 0
          %573 = vmatpush1.bf16.xpose.msra.mxu0 0
          %574 = vmatprep.subr.bf16.mxu0 0
          %575 = vmatpush1.bf16.xpose.msra.mxu0 0
          %576 = vmatprep.subr.bf16.mxu0 0
          %577 = vmatpush1.bf16.xpose.msra.mxu0 0
          %578 = vmatprep.subr.bf16.mxu0 0
          %579 = vmatpush1.bf16.xpose.msra.mxu0 0
          %580 = vmatprep.subr.bf16.mxu0 0
          %581 = vmatpush1.bf16.xpose.msra.mxu0 0
          %582 = vmatprep.subr.bf16.mxu0 0
          %583 = vmatpush1.bf16.xpose.msra.mxu0 0
          %584 = vmatprep.mubr.bf16.mxu0 0
          %585 = vmatmul.mubr.bf16.gmra.mrb[0].mxu0 %v550
          %v586 = vpop.f32.mrb[0].mxu0
          %v587 = vadd.f32 0.0, %v586
          %v588 = vpop.f32.mrb[0].mxu0
          %v589 = vpop.f32.mrb[0].mxu0
          %v590 = vpop.f32.mrb[0].mxu0
          %591 = vdwg.mxu0
          %v592 = vmax.f32 %v587, 0.0
          %v593 = vmin.f32 %v592, 1.0
          %s594 = sadd.s32 16, %s397
          %s595 = scalar_lea.vmem %s279, %s594 [#allocation8]
          %596 = vst.msk [vmem:[%s595] sm:$0xff] %vm399, %v593
          %s597 = scalar_lea.vmem %s238, 24 [#allocation5]
          %v598 = vld [vmem:[%s597] sm:$0xf]
          %v599 = vld [vmem:[%s597 + $0x4] sm:$0xf]
          %v602 = vunpack.c.l.b16 %v598
          %v603 = vunpack.c.l.b16 %v599
          %v604 = vpack.c.b16 %v603, %v602
          %606 = vmatprep.subr.bf16.mxu0 0
          %607 = vmatpush1.bf16.msra.mxu0 %v604
          %608 = vmatprep.subr.bf16.mxu0 0
          %609 = vmatpush1.bf16.msra.mxu0 0
          %610 = vmatprep.subr.bf16.mxu0 0
          %611 = vmatpush1.bf16.msra.mxu0 0
          %612 = vmatprep.subr.bf16.mxu0 0
          %613 = vmatpush1.bf16.msra.mxu0 0
          %614 = vmatprep.subr.bf16.mxu0 0
          %615 = vmatpush1.bf16.msra.mxu0 0
          %616 = vmatprep.subr.bf16.mxu0 0
          %617 = vmatpush1.bf16.msra.mxu0 0
          %618 = vmatprep.subr.bf16.mxu0 0
          %619 = vmatpush1.bf16.msra.mxu0 0
          %620 = vmatprep.subr.bf16.mxu0 0
          %621 = vmatpush1.bf16.msra.mxu0 0
          %622 = vmatprep.subr.bf16.mxu0 0
          %623 = vmatpush1.bf16.msra.mxu0 0
          %624 = vmatprep.subr.bf16.mxu0 0
          %625 = vmatpush1.bf16.msra.mxu0 0
          %626 = vmatprep.subr.bf16.mxu0 0
          %627 = vmatpush1.bf16.msra.mxu0 0
          %628 = vmatprep.subr.bf16.mxu0 0
          %629 = vmatpush1.bf16.msra.mxu0 0
          %630 = vmatprep.subr.bf16.mxu0 0
          %631 = vmatpush1.bf16.msra.mxu0 0
          %632 = vmatprep.subr.bf16.mxu0 0
          %633 = vmatpush1.bf16.msra.mxu0 0
          %634 = vmatprep.subr.bf16.mxu0 0
          %635 = vmatpush1.bf16.msra.mxu0 0
          %636 = vmatprep.subr.bf16.mxu0 0
          %637 = vmatpush1.bf16.msra.mxu0 0
          %638 = vmatprep.mubr.bf16.mxu0 0
          %639 = vmatmul.mubr.bf16.gmra.mrb[0].mxu0 %v306
          %v640 = vpop.f32.mrb[0].mxu0
          %v641 = vadd.f32 0.0, %v640
          %v642 = vpop.f32.mrb[0].mxu0
          %v643 = vpop.f32.mrb[0].mxu0
          %v644 = vpop.f32.mrb[0].mxu0
          %645 = vdwg.mxu0
          %v646 = vpack.c.bf16 %v641, %v641
          %v648 = vsel %vm304, %v646, 0
          %650 = vmatprep.subr.bf16.mxu0 0
          %651 = vmatpush1.bf16.xpose.msra.mxu0 %v353
          %652 = vmatprep.subr.bf16.mxu0 0
          %653 = vmatpush1.bf16.xpose.msra.mxu0 0
          %654 = vmatprep.subr.bf16.mxu0 0
          %655 = vmatpush1.bf16.xpose.msra.mxu0 0
          %656 = vmatprep.subr.bf16.mxu0 0
          %657 = vmatpush1.bf16.xpose.msra.mxu0 0
          %658 = vmatprep.subr.bf16.mxu0 0
          %659 = vmatpush1.bf16.xpose.msra.mxu0 0
          %660 = vmatprep.subr.bf16.mxu0 0
          %661 = vmatpush1.bf16.xpose.msra.mxu0 0
          %662 = vmatprep.subr.bf16.mxu0 0
          %663 = vmatpush1.bf16.xpose.msra.mxu0 0
          %664 = vmatprep.subr.bf16.mxu0 0
          %665 = vmatpush1.bf16.xpose.msra.mxu0 0
          %666 = vmatprep.subr.bf16.mxu0 0
          %667 = vmatpush1.bf16.xpose.msra.mxu0 0
          %668 = vmatprep.subr.bf16.mxu0 0
          %669 = vmatpush1.bf16.xpose.msra.mxu0 0
          %670 = vmatprep.subr.bf16.mxu0 0
          %671 = vmatpush1.bf16.xpose.msra.mxu0 0
          %672 = vmatprep.subr.bf16.mxu0 0
          %673 = vmatpush1.bf16.xpose.msra.mxu0 0
          %674 = vmatprep.subr.bf16.mxu0 0
          %675 = vmatpush1.bf16.xpose.msra.mxu0 0
          %676 = vmatprep.subr.bf16.mxu0 0
          %677 = vmatpush1.bf16.xpose.msra.mxu0 0
          %678 = vmatprep.subr.bf16.mxu0 0
          %679 = vmatpush1.bf16.xpose.msra.mxu0 0
          %680 = vmatprep.subr.bf16.mxu0 0
          %681 = vmatpush1.bf16.xpose.msra.mxu0 0
          %682 = vmatprep.mubr.bf16.mxu0 0
          %683 = vmatmul.mubr.bf16.gmra.mrb[0].mxu0 %v648
          %v684 = vpop.f32.mrb[0].mxu0
          %v685 = vadd.f32 0.0, %v684
          %v686 = vpop.f32.mrb[0].mxu0
          %v687 = vpop.f32.mrb[0].mxu0
          %v688 = vpop.f32.mrb[0].mxu0
          %689 = vdwg.mxu0
          %v690 = vmax.f32 %v685, 0.0
          %v691 = vmin.f32 %v690, 1.0
          %s692 = sadd.s32 24, %s397
          %s693 = scalar_lea.vmem %s279, %s692 [#allocation8]
          %694 = vst.msk [vmem:[%s693] sm:$0xff] %vm399, %v691
        $region49: #{tpu_custom_call.1} parent=31 // loop_footer
          %s289 = sadd.s32 1, %s285
        $region50: #{tpu_custom_call.1} parent=31 // loop_footer_branch
          %284 = sbr.rel target = $region46
        $region51: #{tpu_custom_call.1} parent=31 // loop_exit
          _
        %s695 = sand.u32 %s123, 1
        %s696 = scalar_lea.sflag [#allocation4], %s695
        %s697 = sand.u32 %s123, 1
        %s698 = smul.addr %s697, 64
        %s699 = scalar_lea.vmem [#allocation8], %s698
        // Predicated region
        $region52: #{tpu_custom_call.1} parent=31 // pred_check
          %p700 = pneg %p133
        $region53: #{tpu_custom_call.1} parent=31 // pred_check_branch
          %702 = sbr.rel (%p700) target = $region55
        $region54: #{tpu_custom_call.1} parent=31 // pred_region
          #allocation10 [shape = 'u32[6]{0}', space=smem, size = 0x18, scoped, tag = 'DMA stride descriptor']
          %s703 = smul.u32 2, %s28
          %s705 = ssub.s32 1024, 1024
          %706 = vsyncadd %s696, %s705
          %s707 = smul.addr %s27, 4
          %s708 = smul.addr %s703, 8
          %s709 = sadd.s32 %s707, %s708
          %s710 = smul.addr %s709, 128
          %s711 = scalar_lea.hbm %s3, %s710
          %s713 = sshll.u32 1, 14
          %s714 = sxor.u32 4294967295, %s713
          %s717 = sshll.u32 7, 18
          %s718 = sxor.u32 4294967295, %s717
          %s719 = sand.u32 0, %s718
          %s721 = sor.u32 %s719, 0
          %s723 = sshll.u32 3, 24
          %s724 = sxor.u32 4294967295, %s723
          %s725 = sand.u32 %s721, %s724
          %s727 = sor.u32 %s725, 0
          %s728 = sshll.u32 %s699, 4
          %s729 = int_to_ptr.vmem [resolvable:$true] %s728
          %735 = sst [smem:[#allocation10]] 512
          %s736 = scalar_lea.smem [#allocation10], 1
          %737 = sst [smem:[%s736]] 1024
          %s738 = scalar_lea.smem [#allocation10], 2
          %739 = sst [smem:[%s738]] 4
          %s740 = scalar_lea.smem [#allocation10], 3
          %741 = sst [smem:[%s740]] 128
          %s742 = scalar_lea.smem [#allocation10], 4
          %743 = sst [smem:[%s742]] 128
          %s744 = scalar_lea.smem [#allocation10], 5
          %745 = sst [smem:[%s744]] 8
          %747 = dma.general %s729, 1024, %s711, %s696, [#allocation9], [#allocation10], %s727, 0
        $region55: #{tpu_custom_call.1} parent=31 // pred_fallthru
          _
      $region32: #{tpu_custom_call.1} parent=5 // pred_fallthru
        _
      %p748 = scmp.le.s32.totalorder 2, %s18
      // Predicated region
      $region56: #{tpu_custom_call.1} parent=5 // pred_check
        %p749 = pneg %p748
      $region57: #{tpu_custom_call.1} parent=5 // pred_check_branch
        %751 = sbr.rel (%p749) target = $region59
      $region58: #{tpu_custom_call.1} parent=5 // pred_region
        %s752 = ssub.s32 %s18, 2
        // Predicated region
        $region60: #{tpu_custom_call.1} parent=58 // pred_check
          %p753 = pneg %p139
        $region61: #{tpu_custom_call.1} parent=58 // pred_check_branch
          %755 = sbr.rel (%p753) target = $region63
        $region62: #{tpu_custom_call.1} parent=58 // pred_region
          %s756 = sand.u32 %s124, 1
          %s757 = scalar_lea.sflag [#allocation4], %s756
          %s758 = sand.u32 %s124, 1
          %s759 = smul.addr %s758, 64
          %s760 = scalar_lea.vmem [#allocation8], %s759
          %761 = dma.done %s757, 1024
        $region63: #{tpu_custom_call.1} parent=58 // pred_fallthru
          _
      $region59: #{tpu_custom_call.1} parent=5 // pred_fallthru
        _
    $region6: #{tpu_custom_call.1} parent=1 // loop_footer
      %s22 = sadd.s32 1, %s18
    $region7: #{tpu_custom_call.1} parent=1 // loop_footer_branch
      %17 = sbr.rel target = $region3
    $region8: #{tpu_custom_call.1} parent=1 // loop_exit
      _
    %762 = vsyncpa [#allocation3], 1
    %s763 = scalar_lea.sflag [#allocation3], 1
    %764 = vsyncpa %s763, 1
    %765 = vsyncpa [#allocation6], 1
    %s766 = scalar_lea.sflag [#allocation6], 1
    %767 = vsyncpa %s766, 1
    %768 = vsyncpa [#allocation4], 1
    %s769 = scalar_lea.sflag [#allocation4], 1
    %770 = vsyncpa %s769, 1

</llo_original>
